<compile_context>
chip_gen: v7x
topology: tpu7x:2x2x1
jax: 0.10.0
libtpu: 0.0.40
codegen_flags: <defaults>
</compile_context>

<pallas_src>
import functools

import jax
import jax.numpy as jnp
from jax import lax
from jax.experimental import pallas as pl
from jax.experimental.pallas import tpu as pltpu


def _round_up(n, m):
    return (n + m - 1) // m * m


def _vmem_capacity_bytes():
    """Physical VMEM per TensorCore; conservative fallback if the query fails."""
    try:
        info = pltpu.get_tpu_info()
        cap = getattr(info, "vmem_capacity_bytes", None)
        if cap:
            return int(cap)
    except Exception:
        pass
    return 64 * 1024 * 1024  # v7x-sized fallback (safe lower bound on v5e/v6e)


def _tensorcores_per_chip():
    """Best-effort TensorCores-per-chip; only used to keep >=1 grid step per core."""
    try:
        kind = jax.devices()[0].device_kind.lower()
    except Exception:
        return 1
    if "v7" in kind or "7x" in kind:
        return 2
    if ("v4" in kind) or ("v5p" in kind) or ("v5 p" in kind):
        return 2
    return 1


# ----------------------------------------------------------------------------- kernels


def scse_fused_kernel(x_ref, w1_ref, b1_ref, w2_ref, b2_ref, wc_ref, bc_ref, o_ref,
                      *, inv_hw):
    """One grid step: a (TB, C, HW) slab; channels on sublanes, spatial on lanes."""
    x = x_ref[...]                                            # (TB, C, HW), native dtype
    tb = x.shape[0]

    # ---- SpatialGate2d: global average pool (f32 accumulation) + 2-layer MLP ----
    s = jnp.sum(x.astype(jnp.float32), axis=2, keepdims=True) * inv_hw   # (TB, C, 1)
    # Tiny weights arrive once as (1, Cr, C)/(1, C, Cr); broadcast in-regs only.
    w1 = jnp.broadcast_to(w1_ref[...], (tb,) + tuple(w1_ref.shape[1:]))  # (TB, Cr, C)
    h = lax.dot_general(w1, s,
                        dimension_numbers=(((2,), (1,)), ((0,), (0,))),
                        preferred_element_type=jnp.float32) + b1_ref[...]  # (TB, Cr, 1)
    h = jnp.maximum(h, 0.0)
    w2 = jnp.broadcast_to(w2_ref[...], (tb,) + tuple(w2_ref.shape[1:]))  # (TB, C, Cr)
    z = lax.dot_general(w2, h,
                        dimension_numbers=(((2,), (1,)), ((0,), (0,))),
                        preferred_element_type=jnp.float32) + b2_ref[...]  # (TB, C, 1)
    a = jax.nn.sigmoid(z)                                                  # (TB, C, 1) f32

    # ---- ChannelGate2d (1x1 conv): VPU multiply + sublane reduction over C ----
    wc = wc_ref[...].astype(x.dtype)                                       # (1, C, 1)
    t = jnp.sum((x * wc).astype(jnp.float32), axis=1, keepdims=True) + bc_ref[0]
    m = jax.nn.sigmoid(t)                                                  # (TB, 1, HW)

    # ---- Fused gates: x*a + x*m == x*(a+m); gating multiply in native dtype ----
    o_ref[...] = (x * (a.astype(x.dtype) + m.astype(x.dtype))).astype(o_ref.dtype)


def scse_apply_kernel(a_ref, x_ref, wc_ref, bc_ref, o_ref):
    """Apply pass for the two-pass fallback: per-(batch, hw-tile) gating."""
    x = x_ref[...]                                            # (1, C, THW)
    wc = wc_ref[...].astype(x.dtype)                          # (1, C, 1)
    t = jnp.sum((x * wc).astype(jnp.float32), axis=1, keepdims=True) + bc_ref[0]
    m = jax.nn.sigmoid(t)                                     # (1, 1, THW)
    a = a_ref[...]                                            # (1, C, 1) f32
    o_ref[...] = (x * (a.astype(x.dtype) + m.astype(x.dtype))).astype(o_ref.dtype)


# ----------------------------------------------------------------------------- wrappers


def _scse_two_pass(x3, w1, b1, w2, b2, wc_3, bc_1, *, budget, vmem_cap):
    """Fallback when one (C, HW) slab does not fit the VMEM block budget."""
    B, C, HW = x3.shape
    f32 = jnp.float32

    # Pass 1 (tiny, bandwidth-cheap): global average pool + SE MLP in plain JAX.
    s = jnp.mean(x3, axis=2, dtype=f32)                       # (B, C)
    h = jax.nn.relu(s @ w1.astype(f32).T + b1.astype(f32))    # (B, Cr)
    z = h @ w2.astype(f32).T + b2.astype(f32)                 # (B, C)
    a = jax.nn.sigmoid(z)[:, :, None]                         # (B, C, 1)

    # Pass 2: Pallas apply kernel gridded over (batch, hw tiles).  The HW tile
    # is a multiple of 128 (lane-dense stores); the channel dim stays full.
    in_bytes = C * x3.dtype.itemsize
    f32_bytes = C * 4
    per_lane = 4 * in_bytes + 2 * f32_bytes                   # dbl-buffered in+out + f32 scratch
    thw = (budget // per_lane) // 128 * 128
    thw = max(128, min(thw, _round_up(HW, 128)))
    nhw = pl.cdiv(HW, thw)

    block_vmem = thw * per_lane
    vmem_limit = max(block_vmem + (4 << 20), 32 << 20)
    vmem_limit = int(min(vmem_limit, int(vmem_cap * 0.98)))
    vmem_limit = int(max(vmem_limit, block_vmem))             # never under-provision

    out = pl.pallas_call(
        scse_apply_kernel,
        out_shape=jax.ShapeDtypeStruct((B, C, HW), x3.dtype),
        grid_spec=pltpu.PrefetchScalarGridSpec(
            num_scalar_prefetch=0,
            grid=(B, nhw),
            in_specs=[
                pl.BlockSpec((1, C, 1), lambda i, j: (i, 0, 0)),     # per-channel gate a
                pl.BlockSpec((1, C, thw), lambda i, j: (i, 0, j)),   # x tile
                pl.BlockSpec((1, C, 1), lambda i, j: (0, 0, 0)),     # conv weight column
                pl.BlockSpec(memory_space=pltpu.MemorySpace.SMEM),   # conv bias scalar
            ],
            out_specs=pl.BlockSpec((1, C, thw), lambda i, j: (i, 0, j)),
        ),
        compiler_params=pltpu.CompilerParams(
            dimension_semantics=("parallel", "parallel"),
            vmem_limit_bytes=vmem_limit,
        ),
    )(a, x3, wc_3, bc_1)
    return out


def scse_pallas(x, w1, b1, w2, b2, wc, bc, *, vmem_budget_bytes=None):
    """x: (B, C, H, W). Param shapes follow the PyTorch module:
       w1: (Cr, C), b1: (Cr,), w2: (C, Cr), b2: (C,), wc: (C,), bc: (1,) or ()."""
    B, C, H, W = x.shape
    Cr = w1.shape[0]
    HW = H * W

    vmem_cap = _vmem_capacity_bytes()
    budget = (int(vmem_budget_bytes) if vmem_budget_bytes is not None
              else int(vmem_cap * 0.75))                      # ~96 MiB v5e/v6e, ~48 MiB v7x

    x3 = x.reshape(B, C, HW)                                  # metadata-only view

    f32 = jnp.float32
    w1_3 = w1.astype(f32).reshape(1, Cr, C)
    b1_3 = b1.astype(f32).reshape(1, Cr, 1)
    w2_3 = w2.astype(f32).reshape(1, C, Cr)
    b2_3 = b2.astype(f32).reshape(1, C, 1)
    wc_3 = wc.astype(f32).reshape(1, C, 1)
    bc_1 = jnp.asarray(bc, f32).reshape(1)                    # scalar, lives in SMEM

    # Per-batch-element VMEM working set: double-buffered in + out blocks in the
    # input dtype plus ~2 slab-sized f32 intermediates (reduction upcasts).
    in_bytes = C * HW * x.dtype.itemsize
    f32_bytes = C * HW * 4
    per_b = 4 * in_bytes + 2 * f32_bytes

    if per_b > budget:
        # TODO(synk): the pooling pass of the fallback could also be a Pallas
        # reduction kernel; the tiny (B, C) MLP itself is not worth a kernel.
        out = _scse_two_pass(x3, w1, b1, w2, b2, wc_3, bc_1,
                             budget=budget, vmem_cap=vmem_cap)
        return out.reshape(B, C, H, W)

    # Batch tile: biggest block that fits the budget; on multi-TensorCore chips
    # keep >= num_cores grid steps so dimension_semantics=('parallel',) shards work.
    tb = max(1, budget // per_b)
    tb = min(tb, B)
    cores = _tensorcores_per_chip()
    if cores > 1 and B >= cores:
        tb = min(tb, pl.cdiv(B, cores))
    num_blocks = pl.cdiv(B, tb)                               # last block may be partial

    block_vmem = tb * per_b
    param_vmem = 8 * 4 * (2 * Cr * C + 2 * C + Cr + 2)        # double-buffered f32 params (tiny)
    vmem_limit = max(block_vmem + param_vmem + (4 << 20), 32 << 20)
    vmem_limit = int(min(vmem_limit, int(vmem_cap * 0.98)))
    vmem_limit = int(max(vmem_limit, block_vmem + param_vmem))  # never under-provision

    full3 = lambda a: pl.BlockSpec(a.shape, lambda i: (0, 0, 0))
    kernel = functools.partial(scse_fused_kernel, inv_hw=1.0 / HW)

    out = pl.pallas_call(
        kernel,
        out_shape=jax.ShapeDtypeStruct((B, C, HW), x.dtype),
        grid_spec=pltpu.PrefetchScalarGridSpec(
            num_scalar_prefetch=0,
            grid=(num_blocks,),
            in_specs=[
                pl.BlockSpec((tb, C, HW), lambda i: (i, 0, 0)),      # x slab
                full3(w1_3),                                         # (1, Cr, C)
                full3(b1_3),                                         # (1, Cr, 1)
                full3(w2_3),                                         # (1, C, Cr)
                full3(b2_3),                                         # (1, C, 1)
                full3(wc_3),                                         # (1, C, 1)
                pl.BlockSpec(memory_space=pltpu.MemorySpace.SMEM),   # bc scalar
            ],
            out_specs=pl.BlockSpec((tb, C, HW), lambda i: (i, 0, 0)),
        ),
        compiler_params=pltpu.CompilerParams(
            dimension_semantics=("parallel",),
            vmem_limit_bytes=vmem_limit,
        ),
    )(x3, w1_3, b1_3, w2_3, b2_3, wc_3, bc_1)

    return out.reshape(B, C, H, W)


def scse_ref(x, w1, b1, w2, b2, wc, bc):
    """Pure-JAX reference mirroring the PyTorch forward."""
    B, C, H, W = x.shape
    s = x.reshape(B, C, H * W).mean(-1)                       # (B, C)
    h = jax.nn.relu(s @ w1.T + b1)                            # (B, Cr)
    z = h @ w2.T + b2                                         # (B, C)
    a = jax.nn.sigmoid(z)[:, :, None, None]
    g1 = x * a
    t = jnp.einsum("c,bchw->bhw", wc, x) + jnp.reshape(bc, ())  # (B, H, W)
    m = jax.nn.sigmoid(t)[:, None, :, :]
    g2 = x * m
    return g1 + g2


if __name__ == "__main__":
    # SCSE uses r=16, so pick C = 32 -> hidden = 2.
    B, C, H, W = 2, 32, 16, 16
    Cr = C // 16

    key = jax.random.PRNGKey(0)
    kx, k1, k2, k3, k4, k5, k6 = jax.random.split(key, 7)

    x = jax.random.normal(kx, (B, C, H, W), dtype=jnp.float32)

    # Deterministic synthetic parameters (shapes match the nn.Module __init__).
    w1 = jax.random.normal(k1, (Cr, C), dtype=jnp.float32) * 0.1   # linear_1.weight
    b1 = jax.random.normal(k2, (Cr,), dtype=jnp.float32) * 0.1     # linear_1.bias
    w2 = jax.random.normal(k3, (C, Cr), dtype=jnp.float32) * 0.1   # linear_2.weight
    b2 = jax.random.normal(k4, (C,), dtype=jnp.float32) * 0.1      # linear_2.bias
    wc = jax.random.normal(k5, (C,), dtype=jnp.float32) * 0.1      # conv.weight (1,C,1,1)
    bc = jax.random.normal(k6, (1,), dtype=jnp.float32) * 0.1      # conv.bias (1,)

    ref = scse_ref(x, w1, b1, w2, b2, wc, bc)

    # Primary (fused) path.
    out = jax.block_until_ready(scse_pallas(x, w1, b1, w2, b2, wc, bc))
    assert out.shape == (B, C, H, W)
    assert jnp.allclose(out, ref, atol=1e-5, rtol=1e-5), "fused path mismatch vs reference"

    # Force the two-pass (pool -> apply) fallback used when a (C, H*W) slab
    # would not fit the VMEM block budget (e.g. huge feature maps on v7x).
    out2 = jax.block_until_ready(
        scse_pallas(x, w1, b1, w2, b2, wc, bc, vmem_budget_bytes=64 * 1024))
    assert jnp.allclose(out2, ref, atol=1e-5, rtol=1e-5), "two-pass path mismatch vs reference"

    print("KERNEL_OK")
</pallas_src>

<mosaic_0001>
module attributes {stable_mosaic.version = 11 : i64} {
  func.func @scse_fused_kernel(%arg0: i32, %arg1: memref<2x32x256xf32, #tpu.memory_space<vmem>>, %arg2: memref<1x2x32xf32, #tpu.memory_space<vmem>>, %arg3: memref<1x2x1xf32, #tpu.memory_space<vmem>>, %arg4: memref<1x32x2xf32, #tpu.memory_space<vmem>>, %arg5: memref<1x32x1xf32, #tpu.memory_space<vmem>>, %arg6: memref<1x32x1xf32, #tpu.memory_space<vmem>>, %arg7: memref<1xf32, #tpu.memory_space<smem>>, %arg8: memref<2x32x256xf32, #tpu.memory_space<vmem>>) attributes {dimension_semantics = [#tpu.dimension_semantics<parallel>], iteration_bounds = array<i64: 1>, scalar_prefetch = 0 : i64, scratch_operands = 0 : i64, tpu.core_type = #tpu.core_type<tc>, window_params = [{transform_indices = @transform_0, window_bounds = array<i64: 2, 32, 256>}, {pipeline_mode = #tpu.pipeline_mode<synchronous>, transform_indices = @transform_1, window_bounds = array<i64: 1, 2, 32>}, {pipeline_mode = #tpu.pipeline_mode<synchronous>, transform_indices = @transform_2, window_bounds = array<i64: 1, 2, 1>}, {pipeline_mode = #tpu.pipeline_mode<synchronous>, transform_indices = @transform_3, window_bounds = array<i64: 1, 32, 2>}, {pipeline_mode = #tpu.pipeline_mode<synchronous>, transform_indices = @transform_4, window_bounds = array<i64: 1, 32, 1>}, {pipeline_mode = #tpu.pipeline_mode<synchronous>, transform_indices = @transform_5, window_bounds = array<i64: 1, 32, 1>}, {transform_indices = @transform_6, window_bounds = array<i64: 1>}, {transform_indices = @transform_7, window_bounds = array<i64: 2, 32, 256>}]} {
    %c0 = arith.constant 0 : index
    %c0_0 = arith.constant 0 : index
    %c0_1 = arith.constant 0 : index
    %0 = vector.load %arg1[%c0, %c0_0, %c0_1] : memref<2x32x256xf32, #tpu.memory_space<vmem>>, vector<2x32x256xf32>
    %cst = arith.constant dense<0.000000e+00> : vector<2x32xf32>
    %1 = vector.multi_reduction <add>, %0, %cst [2] : vector<2x32x256xf32> to vector<2x32xf32>
    %2 = vector.shape_cast %1 : vector<2x32xf32> to vector<2x32x1xf32>
    %cst_2 = arith.constant 3.906250e-03 : f32
    %3 = vector.broadcast %cst_2 : f32 to vector<2x32x1xf32>
    %4 = arith.mulf %2, %3 : vector<2x32x1xf32>
    %c0_3 = arith.constant 0 : index
    %c0_4 = arith.constant 0 : index
    %c0_5 = arith.constant 0 : index
    %5 = vector.load %arg2[%c0_3, %c0_4, %c0_5] : memref<1x2x32xf32, #tpu.memory_space<vmem>>, vector<1x2x32xf32>
    %6 = vector.shape_cast %5 : vector<1x2x32xf32> to vector<1x2x32xf32>
    %7 = vector.broadcast %6 : vector<1x2x32xf32> to vector<2x2x32xf32>
    %cst_6 = arith.constant dense<0.000000e+00> : vector<2x2x1xf32>
    %8 = tpu.matmul %7, %4, %cst_6 {dimension_numbers = #tpu.dot_dimension_numbers<[2], [1], [1], [2], [0, 0, 0, 1, 1, 2], [0], [0]>} : vector<2x2x32xf32>, vector<2x32x1xf32>, vector<2x2x1xf32> -> vector<2x2x1xf32>
    %c0_7 = arith.constant 0 : index
    %c0_8 = arith.constant 0 : index
    %c0_9 = arith.constant 0 : index
    %9 = vector.load %arg3[%c0_7, %c0_8, %c0_9] : memref<1x2x1xf32, #tpu.memory_space<vmem>>, vector<1x2x1xf32>
    %10 = vector.broadcast %9 : vector<1x2x1xf32> to vector<2x2x1xf32>
    %11 = arith.addf %8, %10 : vector<2x2x1xf32>
    %cst_10 = arith.constant 0.000000e+00 : f32
    %12 = vector.broadcast %cst_10 : f32 to vector<2x2x1xf32>
    %13 = arith.maximumf %11, %12 : vector<2x2x1xf32>
    %c0_11 = arith.constant 0 : index
    %c0_12 = arith.constant 0 : index
    %c0_13 = arith.constant 0 : index
    %14 = vector.load %arg4[%c0_11, %c0_12, %c0_13] : memref<1x32x2xf32, #tpu.memory_space<vmem>>, vector<1x32x2xf32>
    %15 = vector.shape_cast %14 : vector<1x32x2xf32> to vector<1x32x2xf32>
    %16 = vector.broadcast %15 : vector<1x32x2xf32> to vector<2x32x2xf32>
    %cst_14 = arith.constant dense<0.000000e+00> : vector<2x32x1xf32>
    %17 = tpu.matmul %16, %13, %cst_14 {dimension_numbers = #tpu.dot_dimension_numbers<[2], [1], [1], [2], [0, 0, 0, 1, 1, 2], [0], [0]>} : vector<2x32x2xf32>, vector<2x2x1xf32>, vector<2x32x1xf32> -> vector<2x32x1xf32>
    %c0_15 = arith.constant 0 : index
    %c0_16 = arith.constant 0 : index
    %c0_17 = arith.constant 0 : index
    %18 = vector.load %arg5[%c0_15, %c0_16, %c0_17] : memref<1x32x1xf32, #tpu.memory_space<vmem>>, vector<1x32x1xf32>
    %19 = vector.broadcast %18 : vector<1x32x1xf32> to vector<2x32x1xf32>
    %20 = arith.addf %17, %19 : vector<2x32x1xf32>
    %21 = arith.negf %20 : vector<2x32x1xf32>
    %22 = math.exp %21 : vector<2x32x1xf32>
    %cst_18 = arith.constant 1.000000e+00 : f32
    %23 = vector.broadcast %cst_18 : f32 to vector<2x32x1xf32>
    %24 = arith.addf %23, %22 : vector<2x32x1xf32>
    %25 = arith.divf %23, %24 : vector<2x32x1xf32>
    %c0_19 = arith.constant 0 : index
    %c0_20 = arith.constant 0 : index
    %c0_21 = arith.constant 0 : index
    %26 = vector.load %arg6[%c0_19, %c0_20, %c0_21] : memref<1x32x1xf32, #tpu.memory_space<vmem>>, vector<1x32x1xf32>
    %27 = vector.broadcast %26 : vector<1x32x1xf32> to vector<2x32x256xf32>
    %28 = arith.mulf %0, %27 : vector<2x32x256xf32>
    %cst_22 = arith.constant dense<0.000000e+00> : vector<2x256xf32>
    %29 = vector.multi_reduction <add>, %28, %cst_22 [1] : vector<2x32x256xf32> to vector<2x256xf32>
    %30 = vector.shape_cast %29 : vector<2x256xf32> to vector<2x1x256xf32>
    %c0_23 = arith.constant 0 : index
    %31 = memref.load %arg7[%c0_23] : memref<1xf32, #tpu.memory_space<smem>>
    %32 = vector.broadcast %31 : f32 to vector<2x1x256xf32>
    %33 = arith.addf %30, %32 : vector<2x1x256xf32>
    %34 = arith.negf %33 : vector<2x1x256xf32>
    %35 = math.exp %34 : vector<2x1x256xf32>
    %cst_24 = arith.constant 1.000000e+00 : f32
    %36 = vector.broadcast %cst_24 : f32 to vector<2x1x256xf32>
    %37 = arith.addf %36, %35 : vector<2x1x256xf32>
    %38 = arith.divf %36, %37 : vector<2x1x256xf32>
    %39 = vector.broadcast %25 : vector<2x32x1xf32> to vector<2x32x256xf32>
    %40 = vector.broadcast %38 : vector<2x1x256xf32> to vector<2x32x256xf32>
    %41 = arith.addf %39, %40 : vector<2x32x256xf32>
    %42 = arith.mulf %0, %41 : vector<2x32x256xf32>
    %c0_25 = arith.constant 0 : index
    %c0_26 = arith.constant 0 : index
    %c0_27 = arith.constant 0 : index
    %43 = vector.load %arg8[%c0_25, %c0_26, %c0_27] : memref<2x32x256xf32, #tpu.memory_space<vmem>>, vector<2x32x256xf32>
    tpu.vector_store %arg8[%c0_25, %c0_26, %c0_27], %42 {strides = array<i32>} : memref<2x32x256xf32, #tpu.memory_space<vmem>>, vector<2x32x256xf32>,
    return
  }
  func.func @transform_0(%arg0: i32) -> (i32, i32, i32) {
    %c0_i32 = arith.constant 0 : i32
    %c0_i32_0 = arith.constant 0 : i32
    %c0_i32_1 = arith.constant 0 : i32
    return %arg0, %c0_i32, %c0_i32_0 : i32, i32, i32
  }
  func.func @transform_1(%arg0: i32) -> (i32, i32, i32) {
    %c0_i32 = arith.constant 0 : i32
    %c0_i32_0 = arith.constant 0 : i32
    %c0_i32_1 = arith.constant 0 : i32
    %c0_i32_2 = arith.constant 0 : i32
    return %c0_i32, %c0_i32_0, %c0_i32_1 : i32, i32, i32
  }
  func.func @transform_2(%arg0: i32) -> (i32, i32, i32) {
    %c0_i32 = arith.constant 0 : i32
    %c0_i32_0 = arith.constant 0 : i32
    %c0_i32_1 = arith.constant 0 : i32
    %c0_i32_2 = arith.constant 0 : i32
    return %c0_i32, %c0_i32_0, %c0_i32_1 : i32, i32, i32
  }
  func.func @transform_3(%arg0: i32) -> (i32, i32, i32) {
    %c0_i32 = arith.constant 0 : i32
    %c0_i32_0 = arith.constant 0 : i32
    %c0_i32_1 = arith.constant 0 : i32
    %c0_i32_2 = arith.constant 0 : i32
    return %c0_i32, %c0_i32_0, %c0_i32_1 : i32, i32, i32
  }
  func.func @transform_4(%arg0: i32) -> (i32, i32, i32) {
    %c0_i32 = arith.constant 0 : i32
    %c0_i32_0 = arith.constant 0 : i32
    %c0_i32_1 = arith.constant 0 : i32
    %c0_i32_2 = arith.constant 0 : i32
    return %c0_i32, %c0_i32_0, %c0_i32_1 : i32, i32, i32
  }
  func.func @transform_5(%arg0: i32) -> (i32, i32, i32) {
    %c0_i32 = arith.constant 0 : i32
    %c0_i32_0 = arith.constant 0 : i32
    %c0_i32_1 = arith.constant 0 : i32
    %c0_i32_2 = arith.constant 0 : i32
    return %c0_i32, %c0_i32_0, %c0_i32_1 : i32, i32, i32
  }
  func.func @transform_6(%arg0: i32) -> i32 {
    %c0_i32 = arith.constant 0 : i32
    %c0_i32_0 = arith.constant 0 : i32
    return %c0_i32 : i32
  }
  func.func @transform_7(%arg0: i32) -> (i32, i32, i32) {
    %c0_i32 = arith.constant 0 : i32
    %c0_i32_0 = arith.constant 0 : i32
    %c0_i32_1 = arith.constant 0 : i32
    return %arg0, %c0_i32, %c0_i32_0 : i32, i32, i32
  }
}

</mosaic_0001>

<llo_original>
// kernel: tpu_custom_call.1
$region0: #{tpu_custom_call.1}
  #allocation0 [shape = 'u32[]', space=smem, size = 0x4, offset = 0x4, fixed_abs, tag = 'smem constant byte address 0x4 - core index']
  #allocation1 [shape = 'u32[144,128]{1,0:T(1,128)}', space=vmem, size = 0x12000, scoped, tag = 'internal scratch']
  #allocation2 [shape = 'f32[1]{0:T(128)S(6)}', space=smem, size = 0x200, scoped, tag = 'scoped memory for tpu_custom_call.1']
  %s0 = inlined_call_operand.hbm [shape: f32[2,32,256], index: 0, kind: input, shape index: {}]
  %s1 = inlined_call_operand.vmem [shape: f32[1,2,32], index: 1, kind: input, shape index: {}]
  %s2 = inlined_call_operand.vmem [shape: f32[1,2,1], index: 2, kind: input, shape index: {}]
  %s3 = inlined_call_operand.vmem [shape: f32[1,32,2], index: 3, kind: input, shape index: {}]
  %s4 = inlined_call_operand.vmem [shape: f32[1,32,1], index: 4, kind: input, shape index: {}]
  %s5 = inlined_call_operand.vmem [shape: f32[1,32,1], index: 5, kind: input, shape index: {}]
  %s6 = inlined_call_operand.<no memory space> [shape: f32[1], index: 6, kind: input, shape index: {}]
  %s7 = inlined_call_operand.hbm [shape: f32[2,32,256], index: 7, kind: output, shape index: {}]
  %s8 = sld [smem:[#allocation0]]
  $region42: #{tpu_custom_call.1} parent=0
    _
  %s10 = ssub.s32 1, %s8
  %s11 = scalar_select 0, %s10, %s8
  %12 = sst [smem:[#allocation2]] %s6
  $region1: #{tpu_custom_call.1} parent=0
    #allocation3 [shape = 'u8[65536]{0}', space=vmem, size = 0x10000, scoped, tag = 'input window, operand 0, single buffered']
    #allocation4 [shape = 's32[1]{0}', space=sflag, size = 0x4, scoped, tag = 'scoped memory for tpu_custom_call.1']
    #allocation5 [shape = 's32[1]{0}', space=sflag, size = 0x4, scoped, tag = 'scoped memory for tpu_custom_call.1']
    #allocation6 [shape = 'u8[65536]{0}', space=vmem, size = 0x10000, scoped, tag = 'output window, operand 0, single buffered']
    %13 = vsyncpa [#allocation4], 0
    %14 = vsyncpa [#allocation5], 0
    // Predicated region
    $region2: #{tpu_custom_call.1} parent=1 // pred_check
      _
    $region3: #{tpu_custom_call.1} parent=1 // pred_check_branch
      %16 = sbr.rel (0) target = $region5
    $region4: #{tpu_custom_call.1} parent=1 // pred_region
      %s18 = ssub.s32 2048, 2048
      %19 = vsyncadd [#allocation4], %s18
      %s20 = sshll.u32 [#allocation3], 4
      %s21 = int_to_ptr.vmem [resolvable:$true] %s20
      %26 = dma.hbm_to_vmem [thread:$0]  %s0, 2048, %s21, [#allocation4], 256, 256, 16
    $region5: #{tpu_custom_call.1} parent=1 // pred_fallthru
      _
    // Predicated region
    $region6: #{tpu_custom_call.1} parent=1 // pred_check
      _
    $region7: #{tpu_custom_call.1} parent=1 // pred_check_branch
      %28 = sbr.rel (0) target = $region9
    $region8: #{tpu_custom_call.1} parent=1 // pred_region
      _
    $region9: #{tpu_custom_call.1} parent=1 // pred_fallthru
      _
    // Predicated region
    $region10: #{tpu_custom_call.1} parent=1 // pred_check
      _
    $region11: #{tpu_custom_call.1} parent=1 // pred_check_branch
      %30 = sbr.rel (0) target = $region13
    $region12: #{tpu_custom_call.1} parent=1 // pred_region
      _
    $region13: #{tpu_custom_call.1} parent=1 // pred_fallthru
      _
    // Predicated region
    $region14: #{tpu_custom_call.1} parent=1 // pred_check
      _
    $region15: #{tpu_custom_call.1} parent=1 // pred_check_branch
      %32 = sbr.rel (0) target = $region17
    $region16: #{tpu_custom_call.1} parent=1 // pred_region
      _
    $region17: #{tpu_custom_call.1} parent=1 // pred_fallthru
      _
    // Predicated region
    $region18: #{tpu_custom_call.1} parent=1 // pred_check
      _
    $region19: #{tpu_custom_call.1} parent=1 // pred_check_branch
      %34 = sbr.rel (0) target = $region21
    $region20: #{tpu_custom_call.1} parent=1 // pred_region
      _
    $region21: #{tpu_custom_call.1} parent=1 // pred_fallthru
      _
    // Predicated region
    $region22: #{tpu_custom_call.1} parent=1 // pred_check
      _
    $region23: #{tpu_custom_call.1} parent=1 // pred_check_branch
      %36 = sbr.rel (0) target = $region25
    $region24: #{tpu_custom_call.1} parent=1 // pred_region
      _
    $region25: #{tpu_custom_call.1} parent=1 // pred_fallthru
      _
    // Predicated region
    $region26: #{tpu_custom_call.1} parent=1 // pred_check
      _
    $region27: #{tpu_custom_call.1} parent=1 // pred_check_branch
      %38 = sbr.rel (0) target = $region29
    $region28: #{tpu_custom_call.1} parent=1 // pred_region
      _
    $region29: #{tpu_custom_call.1} parent=1 // pred_fallthru
      _
    // Predicated region
    $region30: #{tpu_custom_call.1} parent=1 // pred_check
      _
    $region31: #{tpu_custom_call.1} parent=1 // pred_check_branch
      %40 = sbr.rel (0) target = $region33
    $region32: #{tpu_custom_call.1} parent=1 // pred_region
      %41 = dma.done [#allocation4], 2048
    $region33: #{tpu_custom_call.1} parent=1 // pred_fallthru
      _
    %v42 = vld [vmem:[#allocation3] sm:$0xff]
    %v43 = vld [vmem:[#allocation3 + $0x8] sm:$0xff]
    %v44 = vld [vmem:[#allocation3 + $0x10] sm:$0xff]
    %v45 = vld [vmem:[#allocation3 + $0x18] sm:$0xff]
    %v46 = vld [vmem:[#allocation3 + $0x20] sm:$0xff]
    %v47 = vld [vmem:[#allocation3 + $0x28] sm:$0xff]
    %v48 = vld [vmem:[#allocation3 + $0x30] sm:$0xff]
    %v49 = vld [vmem:[#allocation3 + $0x38] sm:$0xff]
    %v50 = vld [vmem:[#allocation3 + $0x40] sm:$0xff]
    %v51 = vld [vmem:[#allocation3 + $0x48] sm:$0xff]
    %v52 = vld [vmem:[#allocation3 + $0x50] sm:$0xff]
    %v53 = vld [vmem:[#allocation3 + $0x58] sm:$0xff]
    %v54 = vld [vmem:[#allocation3 + $0x60] sm:$0xff]
    %v55 = vld [vmem:[#allocation3 + $0x68] sm:$0xff]
    %v56 = vld [vmem:[#allocation3 + $0x70] sm:$0xff]
    %v57 = vld [vmem:[#allocation3 + $0x78] sm:$0xff]
    %v58 = vadd.f32 %v42, %v43
    %59 = vadd.xlane.f32.xlu0 %v58
    %v60 = vpop.xlane.xlu0 %59
    %v61 = vadd.f32 %v44, %v45
    %62 = vadd.xlane.f32.xlu0 %v61
    %v63 = vpop.xlane.xlu0 %62
    %v64 = vadd.f32 %v46, %v47
    %65 = vadd.xlane.f32.xlu0 %v64
    %v66 = vpop.xlane.xlu0 %65
    %v67 = vadd.f32 %v48, %v49
    %68 = vadd.xlane.f32.xlu0 %v67
    %v69 = vpop.xlane.xlu0 %68
    %v70 = vadd.f32 %v50, %v51
    %71 = vadd.xlane.f32.xlu0 %v70
    %v72 = vpop.xlane.xlu0 %71
    %v73 = vadd.f32 %v52, %v53
    %74 = vadd.xlane.f32.xlu0 %v73
    %v75 = vpop.xlane.xlu0 %74
    %v76 = vadd.f32 %v54, %v55
    %77 = vadd.xlane.f32.xlu0 %v76
    %v78 = vpop.xlane.xlu0 %77
    %v79 = vadd.f32 %v56, %v57
    %80 = vadd.xlane.f32.xlu0 %v79
    %v81 = vpop.xlane.xlu0 %80
    %v82 = vmul.f32 %v60, 0.00390625
    %v83 = vmul.f32 %v63, 0.00390625
    %v84 = vmul.f32 %v66, 0.00390625
    %v85 = vmul.f32 %v69, 0.00390625
    %v86 = vmul.f32 %v72, 0.00390625
    %v87 = vmul.f32 %v75, 0.00390625
    %v88 = vmul.f32 %v78, 0.00390625
    %v89 = vmul.f32 %v81, 0.00390625
    %v90 = vld [vmem:[%s1] sm:$0x3]
    %v91 = vld [vmem:[%s2] sm:$0x3]
    %vm92 = vcmask 261120
    %v94 = vsel %vm92, %v90, 0
    %96 = vmatprep.subr.mxu0 0.0
    %97 = vmatpush1.msra.mxu0 %v82
    %98 = vmatprep.subr.mxu0 0.0
    %99 = vmatpush1.msra.mxu0 %v83
    %100 = vmatprep.subr.mxu0 0.0
    %101 = vmatpush1.msra.mxu0 %v84
    %102 = vmatprep.subr.mxu0 0.0
    %103 = vmatpush1.msra.mxu0 %v85
    %104 = vmatprep.subr.mxu0 0.0
    %105 = vmatpush1.msra.mxu0 0.0
    %106 = vmatprep.subr.mxu0 0.0
    %107 = vmatpush1.msra.mxu0 0.0
    %108 = vmatprep.subr.mxu0 0.0
    %109 = vmatpush1.msra.mxu0 0.0
    %110 = vmatprep.subr.mxu0 0.0
    %111 = vmatpush1.msra.mxu0 0.0
    %112 = vmatprep.subr.mxu0 0.0
    %113 = vmatpush1.msra.mxu0 0.0
    %114 = vmatprep.subr.mxu0 0.0
    %115 = vmatpush1.msra.mxu0 0.0
    %116 = vmatprep.subr.mxu0 0.0
    %117 = vmatpush1.msra.mxu0 0.0
    %118 = vmatprep.subr.mxu0 0.0
    %119 = vmatpush1.msra.mxu0 0.0
    %120 = vmatprep.subr.mxu0 0.0
    %121 = vmatpush1.msra.mxu0 0.0
    %122 = vmatprep.subr.mxu0 0.0
    %123 = vmatpush1.msra.mxu0 0.0
    %124 = vmatprep.subr.mxu0 0.0
    %125 = vmatpush1.msra.mxu0 0.0
    %126 = vmatprep.subr.mxu0 0.0
    %127 = vmatpush1.msra.mxu0 0.0
    %128 = vmatprep.subr.mxu0 0.0
    %129 = vmatpush1.msra.mxu0 0.0
    %130 = vmatprep.subr.mxu0 0.0
    %131 = vmatpush1.msra.mxu0 0.0
    %132 = vmatprep.subr.mxu0 0.0
    %133 = vmatpush1.msra.mxu0 0.0
    %134 = vmatprep.subr.mxu0 0.0
    %135 = vmatpush1.msra.mxu0 0.0
    %136 = vmatprep.subr.mxu0 0.0
    %137 = vmatpush1.msra.mxu0 0.0
    %138 = vmatprep.subr.mxu0 0.0
    %139 = vmatpush1.msra.mxu0 0.0
    %140 = vmatprep.subr.mxu0 0.0
    %141 = vmatpush1.msra.mxu0 0.0
    %142 = vmatprep.subr.mxu0 0.0
    %143 = vmatpush1.msra.mxu0 0.0
    %144 = vmatprep.subr.mxu0 0.0
    %145 = vmatpush1.msra.mxu0 0.0
    %146 = vmatprep.subr.mxu0 0.0
    %147 = vmatpush1.msra.mxu0 0.0
    %148 = vmatprep.subr.mxu0 0.0
    %149 = vmatpush1.msra.mxu0 0.0
    %150 = vmatprep.subr.mxu0 0.0
    %151 = vmatpush1.msra.mxu0 0.0
    %152 = vmatprep.subr.mxu0 0.0
    %153 = vmatpush1.msra.mxu0 0.0
    %154 = vmatprep.subr.mxu0 0.0
    %155 = vmatpush1.msra.mxu0 0.0
    %156 = vmatprep.subr.mxu0 0.0
    %157 = vmatpush1.msra.mxu0 0.0
    %158 = vmatprep.subr.mxu0 0.0
    %159 = vmatpush1.msra.mxu0 0.0
    %160 = vmatprep.mubr.f32.mxu0 0.0
    %161 = vmatmul.mubr.f32.gmra.mrb[0].mxu0 %v94
    %v162 = vpop.f32.mrb[0].mxu0
    %v163 = vadd.f32 %v91, %v162
    %v164 = vpop.f32.mrb[0].mxu0
    %165 = vdwg.mxu0
    %166 = vmatprep.subr.mxu0 0.0
    %167 = vmatpush1.msra.mxu0 %v86
    %168 = vmatprep.subr.mxu0 0.0
    %169 = vmatpush1.msra.mxu0 %v87
    %170 = vmatprep.subr.mxu0 0.0
    %171 = vmatpush1.msra.mxu0 %v88
    %172 = vmatprep.subr.mxu0 0.0
    %173 = vmatpush1.msra.mxu0 %v89
    %174 = vmatprep.subr.mxu0 0.0
    %175 = vmatpush1.msra.mxu0 0.0
    %176 = vmatprep.subr.mxu0 0.0
    %177 = vmatpush1.msra.mxu0 0.0
    %178 = vmatprep.subr.mxu0 0.0
    %179 = vmatpush1.msra.mxu0 0.0
    %180 = vmatprep.subr.mxu0 0.0
    %181 = vmatpush1.msra.mxu0 0.0
    %182 = vmatprep.subr.mxu0 0.0
    %183 = vmatpush1.msra.mxu0 0.0
    %184 = vmatprep.subr.mxu0 0.0
    %185 = vmatpush1.msra.mxu0 0.0
    %186 = vmatprep.subr.mxu0 0.0
    %187 = vmatpush1.msra.mxu0 0.0
    %188 = vmatprep.subr.mxu0 0.0
    %189 = vmatpush1.msra.mxu0 0.0
    %190 = vmatprep.subr.mxu0 0.0
    %191 = vmatpush1.msra.mxu0 0.0
    %192 = vmatprep.subr.mxu0 0.0
    %193 = vmatpush1.msra.mxu0 0.0
    %194 = vmatprep.subr.mxu0 0.0
    %195 = vmatpush1.msra.mxu0 0.0
    %196 = vmatprep.subr.mxu0 0.0
    %197 = vmatpush1.msra.mxu0 0.0
    %198 = vmatprep.subr.mxu0 0.0
    %199 = vmatpush1.msra.mxu0 0.0
    %200 = vmatprep.subr.mxu0 0.0
    %201 = vmatpush1.msra.mxu0 0.0
    %202 = vmatprep.subr.mxu0 0.0
    %203 = vmatpush1.msra.mxu0 0.0
    %204 = vmatprep.subr.mxu0 0.0
    %205 = vmatpush1.msra.mxu0 0.0
    %206 = vmatprep.subr.mxu0 0.0
    %207 = vmatpush1.msra.mxu0 0.0
    %208 = vmatprep.subr.mxu0 0.0
    %209 = vmatpush1.msra.mxu0 0.0
    %210 = vmatprep.subr.mxu0 0.0
    %211 = vmatpush1.msra.mxu0 0.0
    %212 = vmatprep.subr.mxu0 0.0
    %213 = vmatpush1.msra.mxu0 0.0
    %214 = vmatprep.subr.mxu0 0.0
    %215 = vmatpush1.msra.mxu0 0.0
    %216 = vmatprep.subr.mxu0 0.0
    %217 = vmatpush1.msra.mxu0 0.0
    %218 = vmatprep.subr.mxu0 0.0
    %219 = vmatpush1.msra.mxu0 0.0
    %220 = vmatprep.subr.mxu0 0.0
    %221 = vmatpush1.msra.mxu0 0.0
    %222 = vmatprep.subr.mxu0 0.0
    %223 = vmatpush1.msra.mxu0 0.0
    %224 = vmatprep.subr.mxu0 0.0
    %225 = vmatpush1.msra.mxu0 0.0
    %226 = vmatprep.subr.mxu0 0.0
    %227 = vmatpush1.msra.mxu0 0.0
    %228 = vmatprep.subr.mxu0 0.0
    %229 = vmatpush1.msra.mxu0 0.0
    %230 = vmatprep.mubr.f32.mxu0 0.0
    %231 = vmatmul.mubr.f32.gmra.mrb[0].mxu0 %v94
    %v232 = vpop.f32.mrb[0].mxu0
    %v233 = vadd.f32 %v91, %v232
    %v234 = vpop.f32.mrb[0].mxu0
    %235 = vdwg.mxu0
    %v236 = vmax.f32 %v163, 0.0
    %v237 = vmax.f32 %v233, 0.0
    %v238 = vld [vmem:[%s3] sm:$0xff]
    %v239 = vld [vmem:[%s3 + $0x8] sm:$0xff]
    %v240 = vld [vmem:[%s3 + $0x10] sm:$0xff]
    %v241 = vld [vmem:[%s3 + $0x18] sm:$0xff]
    %v242 = vld [vmem:[%s4] sm:$0xff]
    %v243 = vld [vmem:[%s4 + $0x8] sm:$0xff]
    %v244 = vld [vmem:[%s4 + $0x10] sm:$0xff]
    %v245 = vld [vmem:[%s4 + $0x18] sm:$0xff]
    %vm246 = vcmask 15360
    %v248 = vsel %vm246, %v238, 0
    %v251 = vsel %vm246, %v239, 0
    %v254 = vsel %vm246, %v240, 0
    %v257 = vsel %vm246, %v241, 0
    %vm259 = vcmask 1041408
    %v261 = vsel %vm259, %v236, 0
    %263 = vmatprep.subr.mxu0 0.0
    %264 = vmatpush1.msra.mxu0 %v261
    %265 = vmatprep.subr.mxu0 0.0
    %266 = vmatpush1.msra.mxu0 0.0
    %267 = vmatprep.subr.mxu0 0.0
    %268 = vmatpush1.msra.mxu0 0.0
    %269 = vmatprep.subr.mxu0 0.0
    %270 = vmatpush1.msra.mxu0 0.0
    %271 = vmatprep.subr.mxu0 0.0
    %272 = vmatpush1.msra.mxu0 0.0
    %273 = vmatprep.subr.mxu0 0.0
    %274 = vmatpush1.msra.mxu0 0.0
    %275 = vmatprep.subr.mxu0 0.0
    %276 = vmatpush1.msra.mxu0 0.0
    %277 = vmatprep.subr.mxu0 0.0
    %278 = vmatpush1.msra.mxu0 0.0
    %279 = vmatprep.subr.mxu0 0.0
    %280 = vmatpush1.msra.mxu0 0.0
    %281 = vmatprep.subr.mxu0 0.0
    %282 = vmatpush1.msra.mxu0 0.0
    %283 = vmatprep.subr.mxu0 0.0
    %284 = vmatpush1.msra.mxu0 0.0
    %285 = vmatprep.subr.mxu0 0.0
    %286 = vmatpush1.msra.mxu0 0.0
    %287 = vmatprep.subr.mxu0 0.0
    %288 = vmatpush1.msra.mxu0 0.0
    %289 = vmatprep.subr.mxu0 0.0
    %290 = vmatpush1.msra.mxu0 0.0
    %291 = vmatprep.subr.mxu0 0.0
    %292 = vmatpush1.msra.mxu0 0.0
    %293 = vmatprep.subr.mxu0 0.0
    %294 = vmatpush1.msra.mxu0 0.0
    %295 = vmatprep.subr.mxu0 0.0
    %296 = vmatpush1.msra.mxu0 0.0
    %297 = vmatprep.subr.mxu0 0.0
    %298 = vmatpush1.msra.mxu0 0.0
    %299 = vmatprep.subr.mxu0 0.0
    %300 = vmatpush1.msra.mxu0 0.0
    %301 = vmatprep.subr.mxu0 0.0
    %302 = vmatpush1.msra.mxu0 0.0
    %303 = vmatprep.subr.mxu0 0.0
    %304 = vmatpush1.msra.mxu0 0.0
    %305 = vmatprep.subr.mxu0 0.0
    %306 = vmatpush1.msra.mxu0 0.0
    %307 = vmatprep.subr.mxu0 0.0
    %308 = vmatpush1.msra.mxu0 0.0
    %309 = vmatprep.subr.mxu0 0.0
    %310 = vmatpush1.msra.mxu0 0.0
    %311 = vmatprep.subr.mxu0 0.0
    %312 = vmatpush1.msra.mxu0 0.0
    %313 = vmatprep.subr.mxu0 0.0
    %314 = vmatpush1.msra.mxu0 0.0
    %315 = vmatprep.subr.mxu0 0.0
    %316 = vmatpush1.msra.mxu0 0.0
    %317 = vmatprep.subr.mxu0 0.0
    %318 = vmatpush1.msra.mxu0 0.0
    %319 = vmatprep.subr.mxu0 0.0
    %320 = vmatpush1.msra.mxu0 0.0
    %321 = vmatprep.subr.mxu0 0.0
    %322 = vmatpush1.msra.mxu0 0.0
    %323 = vmatprep.subr.mxu0 0.0
    %324 = vmatpush1.msra.mxu0 0.0
    %325 = vmatprep.subr.mxu0 0.0
    %326 = vmatpush1.msra.mxu0 0.0
    %327 = vmatprep.mubr.f32.mxu0 0.0
    %328 = vmatmul.mubr.f32.gmra.mrb[0].mxu0 %v248
    %v329 = vpop.f32.mrb[0].mxu0
    %v330 = vadd.f32 %v242, %v329
    %v331 = vpop.f32.mrb[0].mxu0
    %332 = vmatprep.mubr.f32.mxu0 0.0
    %333 = vmatmul.mubr.f32.gmra.mrb[0].mxu0 %v251
    %v334 = vpop.f32.mrb[0].mxu0
    %v335 = vadd.f32 %v243, %v334
    %v336 = vpop.f32.mrb[0].mxu0
    %337 = vmatprep.mubr.f32.mxu0 0.0
    %338 = vmatmul.mubr.f32.gmra.mrb[0].mxu0 %v254
    %v339 = vpop.f32.mrb[0].mxu0
    %v340 = vadd.f32 %v244, %v339
    %v341 = vpop.f32.mrb[0].mxu0
    %342 = vmatprep.mubr.f32.mxu0 0.0
    %343 = vmatmul.mubr.f32.gmra.mrb[0].mxu0 %v257
    %v344 = vpop.f32.mrb[0].mxu0
    %v345 = vadd.f32 %v245, %v344
    %v346 = vpop.f32.mrb[0].mxu0
    %347 = vdwg.mxu0
    %v349 = vsel %vm259, %v237, 0
    %351 = vmatprep.subr.mxu0 0.0
    %352 = vmatpush1.msra.mxu0 %v349
    %353 = vmatprep.subr.mxu0 0.0
    %354 = vmatpush1.msra.mxu0 0.0
    %355 = vmatprep.subr.mxu0 0.0
    %356 = vmatpush1.msra.mxu0 0.0
    %357 = vmatprep.subr.mxu0 0.0
    %358 = vmatpush1.msra.mxu0 0.0
    %359 = vmatprep.subr.mxu0 0.0
    %360 = vmatpush1.msra.mxu0 0.0
    %361 = vmatprep.subr.mxu0 0.0
    %362 = vmatpush1.msra.mxu0 0.0
    %363 = vmatprep.subr.mxu0 0.0
    %364 = vmatpush1.msra.mxu0 0.0
    %365 = vmatprep.subr.mxu0 0.0
    %366 = vmatpush1.msra.mxu0 0.0
    %367 = vmatprep.subr.mxu0 0.0
    %368 = vmatpush1.msra.mxu0 0.0
    %369 = vmatprep.subr.mxu0 0.0
    %370 = vmatpush1.msra.mxu0 0.0
    %371 = vmatprep.subr.mxu0 0.0
    %372 = vmatpush1.msra.mxu0 0.0
    %373 = vmatprep.subr.mxu0 0.0
    %374 = vmatpush1.msra.mxu0 0.0
    %375 = vmatprep.subr.mxu0 0.0
    %376 = vmatpush1.msra.mxu0 0.0
    %377 = vmatprep.subr.mxu0 0.0
    %378 = vmatpush1.msra.mxu0 0.0
    %379 = vmatprep.subr.mxu0 0.0
    %380 = vmatpush1.msra.mxu0 0.0
    %381 = vmatprep.subr.mxu0 0.0
    %382 = vmatpush1.msra.mxu0 0.0
    %383 = vmatprep.subr.mxu0 0.0
    %384 = vmatpush1.msra.mxu0 0.0
    %385 = vmatprep.subr.mxu0 0.0
    %386 = vmatpush1.msra.mxu0 0.0
    %387 = vmatprep.subr.mxu0 0.0
    %388 = vmatpush1.msra.mxu0 0.0
    %389 = vmatprep.subr.mxu0 0.0
    %390 = vmatpush1.msra.mxu0 0.0
    %391 = vmatprep.subr.mxu0 0.0
    %392 = vmatpush1.msra.mxu0 0.0
    %393 = vmatprep.subr.mxu0 0.0
    %394 = vmatpush1.msra.mxu0 0.0
    %395 = vmatprep.subr.mxu0 0.0
    %396 = vmatpush1.msra.mxu0 0.0
    %397 = vmatprep.subr.mxu0 0.0
    %398 = vmatpush1.msra.mxu0 0.0
    %399 = vmatprep.subr.mxu0 0.0
    %400 = vmatpush1.msra.mxu0 0.0
    %401 = vmatprep.subr.mxu0 0.0
    %402 = vmatpush1.msra.mxu0 0.0
    %403 = vmatprep.subr.mxu0 0.0
    %404 = vmatpush1.msra.mxu0 0.0
    %405 = vmatprep.subr.mxu0 0.0
    %406 = vmatpush1.msra.mxu0 0.0
    %407 = vmatprep.subr.mxu0 0.0
    %408 = vmatpush1.msra.mxu0 0.0
    %409 = vmatprep.subr.mxu0 0.0
    %410 = vmatpush1.msra.mxu0 0.0
    %411 = vmatprep.subr.mxu0 0.0
    %412 = vmatpush1.msra.mxu0 0.0
    %413 = vmatprep.subr.mxu0 0.0
    %414 = vmatpush1.msra.mxu0 0.0
    %415 = vmatprep.mubr.f32.mxu0 0.0
    %416 = vmatmul.mubr.f32.gmra.mrb[0].mxu0 %v248
    %v417 = vpop.f32.mrb[0].mxu0
    %v418 = vadd.f32 %v242, %v417
    %v419 = vpop.f32.mrb[0].mxu0
    %420 = vmatprep.mubr.f32.mxu0 0.0
    %421 = vmatmul.mubr.f32.gmra.mrb[0].mxu0 %v251
    %v422 = vpop.f32.mrb[0].mxu0
    %v423 = vadd.f32 %v243, %v422
    %v424 = vpop.f32.mrb[0].mxu0
    %425 = vmatprep.mubr.f32.mxu0 0.0
    %426 = vmatmul.mubr.f32.gmra.mrb[0].mxu0 %v254
    %v427 = vpop.f32.mrb[0].mxu0
    %v428 = vadd.f32 %v244, %v427
    %v429 = vpop.f32.mrb[0].mxu0
    %430 = vmatprep.mubr.f32.mxu0 0.0
    %431 = vmatmul.mubr.f32.gmra.mrb[0].mxu0 %v257
    %v432 = vpop.f32.mrb[0].mxu0
    %v433 = vadd.f32 %v245, %v432
    %v434 = vpop.f32.mrb[0].mxu0
    %435 = vdwg.mxu0
    %v436 = vxor.u32 %v330, 2147483648
    %v437 = vxor.u32 %v335, 2147483648
    %v438 = vxor.u32 %v340, 2147483648
    %v439 = vxor.u32 %v345, 2147483648
    %v440 = vxor.u32 %v418, 2147483648
    %v441 = vxor.u32 %v423, 2147483648
    %v442 = vxor.u32 %v428, 2147483648
    %v443 = vxor.u32 %v433, 2147483648
    %v444 = vmul.f32 %v436, 1.442695
    %v445 = vpow.pop %v444
    %v446 = vmul.f32 %v437, 1.442695
    %v447 = vpow.pop %v446
    %v448 = vmul.f32 %v438, 1.442695
    %v449 = vpow.pop %v448
    %v450 = vmul.f32 %v439, 1.442695
    %v451 = vpow.pop %v450
    %v452 = vmul.f32 %v440, 1.442695
    %v453 = vpow.pop %v452
    %v454 = vmul.f32 %v441, 1.442695
    %v455 = vpow.pop %v454
    %v456 = vmul.f32 %v442, 1.442695
    %v457 = vpow.pop %v456
    %v458 = vmul.f32 %v443, 1.442695
    %v459 = vpow.pop %v458
    %v460 = vadd.f32 %v445, 1.0
    %v461 = vadd.f32 %v447, 1.0
    %v462 = vadd.f32 %v449, 1.0
    %v463 = vadd.f32 %v451, 1.0
    %v464 = vadd.f32 %v453, 1.0
    %v465 = vadd.f32 %v455, 1.0
    %v466 = vadd.f32 %v457, 1.0
    %v467 = vadd.f32 %v459, 1.0
    %v468 = vrcp.pop %v460
    %v469 = vmul.f32 1.0, %v468
    %v470 = vrcp.pop %v461
    %v471 = vmul.f32 1.0, %v470
    %v472 = vrcp.pop %v462
    %v473 = vmul.f32 1.0, %v472
    %v474 = vrcp.pop %v463
    %v475 = vmul.f32 1.0, %v474
    %v476 = vrcp.pop %v464
    %v477 = vmul.f32 1.0, %v476
    %v478 = vrcp.pop %v465
    %v479 = vmul.f32 1.0, %v478
    %v480 = vrcp.pop %v466
    %v481 = vmul.f32 1.0, %v480
    %v482 = vrcp.pop %v467
    %v483 = vmul.f32 1.0, %v482
    %v484 = vld [vmem:[%s5] sm:$0xff]
    %v485 = vld [vmem:[%s5 + $0x8] sm:$0xff]
    %v486 = vld [vmem:[%s5 + $0x10] sm:$0xff]
    %v487 = vld [vmem:[%s5 + $0x18] sm:$0xff]
    %489 = vset.pattern.permute.xlu0 0
    %490 = vperm.xlu0 %489, %v484
    %v491 = vpop.permute.xlu0 %490
    %494 = vset.pattern.permute.xlu0 0
    %495 = vperm.xlu0 %494, %v485
    %v496 = vpop.permute.xlu0 %495
    %499 = vset.pattern.permute.xlu0 0
    %500 = vperm.xlu0 %499, %v486
    %v501 = vpop.permute.xlu0 %500
    %504 = vset.pattern.permute.xlu0 0
    %505 = vperm.xlu0 %504, %v487
    %v506 = vpop.permute.xlu0 %505
    %v508 = vmul.f32 %v42, %v491
    %v509 = vmul.f32 %v43, %v491
    %v510 = vmul.f32 %v44, %v496
    %v511 = vmul.f32 %v45, %v496
    %v512 = vmul.f32 %v46, %v501
    %v513 = vmul.f32 %v47, %v501
    %v514 = vmul.f32 %v48, %v506
    %v515 = vmul.f32 %v49, %v506
    %v516 = vmul.f32 %v50, %v491
    %v517 = vmul.f32 %v51, %v491
    %v518 = vmul.f32 %v52, %v496
    %v519 = vmul.f32 %v53, %v496
    %v520 = vmul.f32 %v54, %v501
    %v521 = vmul.f32 %v55, %v501
    %v522 = vmul.f32 %v56, %v506
    %v523 = vmul.f32 %v57, %v506
    %v524 = vadd.f32 %v508, %v510
    %v525 = vadd.f32 %v524, %v512
    %v526 = vadd.f32 %v525, %v514
    %v527 = vrot.slane %v526, 4
    %v528 = vadd.f32 %v526, %v527
    %v529 = vrot.slane %v528, 2
    %v530 = vadd.f32 %v528, %v529
    %v531 = vrot.slane %v530, 1
    %v532 = vadd.f32 %v530, %v531
    %v533 = vadd.f32 %v509, %v511
    %v534 = vadd.f32 %v533, %v513
    %v535 = vadd.f32 %v534, %v515
    %v536 = vrot.slane %v535, 4
    %v537 = vadd.f32 %v535, %v536
    %v538 = vrot.slane %v537, 2
    %v539 = vadd.f32 %v537, %v538
    %v540 = vrot.slane %v539, 1
    %v541 = vadd.f32 %v539, %v540
    %v542 = vadd.f32 %v516, %v518
    %v543 = vadd.f32 %v542, %v520
    %v544 = vadd.f32 %v543, %v522
    %v545 = vrot.slane %v544, 4
    %v546 = vadd.f32 %v544, %v545
    %v547 = vrot.slane %v546, 2
    %v548 = vadd.f32 %v546, %v547
    %v549 = vrot.slane %v548, 1
    %v550 = vadd.f32 %v548, %v549
    %v551 = vadd.f32 %v517, %v519
    %v552 = vadd.f32 %v551, %v521
    %v553 = vadd.f32 %v552, %v523
    %v554 = vrot.slane %v553, 4
    %v555 = vadd.f32 %v553, %v554
    %v556 = vrot.slane %v555, 2
    %v557 = vadd.f32 %v555, %v556
    %v558 = vrot.slane %v557, 1
    %v559 = vadd.f32 %v557, %v558
    %s560 = sld [smem:[#allocation2]]
    %v561 = vstv %s560
    %v562 = vadd.f32 %v532, %v561
    %v563 = vadd.f32 %v541, %v561
    %v564 = vadd.f32 %v550, %v561
    %v565 = vadd.f32 %v559, %v561
    %v566 = vxor.u32 %v562, 2147483648
    %v567 = vxor.u32 %v563, 2147483648
    %v568 = vxor.u32 %v564, 2147483648
    %v569 = vxor.u32 %v565, 2147483648
    %v570 = vmul.f32 %v566, 1.442695
    %v571 = vpow.pop %v570
    %v572 = vmul.f32 %v567, 1.442695
    %v573 = vpow.pop %v572
    %v574 = vmul.f32 %v568, 1.442695
    %v575 = vpow.pop %v574
    %v576 = vmul.f32 %v569, 1.442695
    %v577 = vpow.pop %v576
    %v578 = vadd.f32 %v571, 1.0
    %v579 = vadd.f32 %v573, 1.0
    %v580 = vadd.f32 %v575, 1.0
    %v581 = vadd.f32 %v577, 1.0
    %v582 = vrcp.pop %v578
    %v583 = vmul.f32 1.0, %v582
    %v584 = vrcp.pop %v579
    %v585 = vmul.f32 1.0, %v584
    %v586 = vrcp.pop %v580
    %v587 = vmul.f32 1.0, %v586
    %v588 = vrcp.pop %v581
    %v589 = vmul.f32 1.0, %v588
    %591 = vset.pattern.permute.xlu0 0
    %592 = vperm.xlu0 %591, %v469
    %v593 = vpop.permute.xlu0 %592
    %596 = vset.pattern.permute.xlu0 0
    %597 = vperm.xlu0 %596, %v471
    %v598 = vpop.permute.xlu0 %597
    %601 = vset.pattern.permute.xlu0 0
    %602 = vperm.xlu0 %601, %v473
    %v603 = vpop.permute.xlu0 %602
    %606 = vset.pattern.permute.xlu0 0
    %607 = vperm.xlu0 %606, %v475
    %v608 = vpop.permute.xlu0 %607
    %611 = vset.pattern.permute.xlu0 0
    %612 = vperm.xlu0 %611, %v477
    %v613 = vpop.permute.xlu0 %612
    %616 = vset.pattern.permute.xlu0 0
    %617 = vperm.xlu0 %616, %v479
    %v618 = vpop.permute.xlu0 %617
    %621 = vset.pattern.permute.xlu0 0
    %622 = vperm.xlu0 %621, %v481
    %v623 = vpop.permute.xlu0 %622
    %626 = vset.pattern.permute.xlu0 0
    %627 = vperm.xlu0 %626, %v483
    %v628 = vpop.permute.xlu0 %627
    %v630 = vadd.f32 %v593, %v583
    %v631 = vadd.f32 %v593, %v585
    %v632 = vadd.f32 %v598, %v583
    %v633 = vadd.f32 %v598, %v585
    %v634 = vadd.f32 %v603, %v583
    %v635 = vadd.f32 %v603, %v585
    %v636 = vadd.f32 %v608, %v583
    %v637 = vadd.f32 %v608, %v585
    %v638 = vadd.f32 %v613, %v587
    %v639 = vadd.f32 %v613, %v589
    %v640 = vadd.f32 %v618, %v587
    %v641 = vadd.f32 %v618, %v589
    %v642 = vadd.f32 %v623, %v587
    %v643 = vadd.f32 %v623, %v589
    %v644 = vadd.f32 %v628, %v587
    %v645 = vadd.f32 %v628, %v589
    %v646 = vmul.f32 %v42, %v630
    %v647 = vmul.f32 %v43, %v631
    %v648 = vmul.f32 %v44, %v632
    %v649 = vmul.f32 %v45, %v633
    %v650 = vmul.f32 %v46, %v634
    %v651 = vmul.f32 %v47, %v635
    %v652 = vmul.f32 %v48, %v636
    %v653 = vmul.f32 %v49, %v637
    %v654 = vmul.f32 %v50, %v638
    %v655 = vmul.f32 %v51, %v639
    %v656 = vmul.f32 %v52, %v640
    %v657 = vmul.f32 %v53, %v641
    %v658 = vmul.f32 %v54, %v642
    %v659 = vmul.f32 %v55, %v643
    %v660 = vmul.f32 %v56, %v644
    %v661 = vmul.f32 %v57, %v645
    %662 = vst [vmem:[#allocation6] sm:$0xff] %v646
    %663 = vst [vmem:[#allocation6 + $0x8] sm:$0xff] %v647
    %664 = vst [vmem:[#allocation6 + $0x10] sm:$0xff] %v648
    %665 = vst [vmem:[#allocation6 + $0x18] sm:$0xff] %v649
    %666 = vst [vmem:[#allocation6 + $0x20] sm:$0xff] %v650
    %667 = vst [vmem:[#allocation6 + $0x28] sm:$0xff] %v651
    %668 = vst [vmem:[#allocation6 + $0x30] sm:$0xff] %v652
    %669 = vst [vmem:[#allocation6 + $0x38] sm:$0xff] %v653
    %670 = vst [vmem:[#allocation6 + $0x40] sm:$0xff] %v654
    %671 = vst [vmem:[#allocation6 + $0x48] sm:$0xff] %v655
    %672 = vst [vmem:[#allocation6 + $0x50] sm:$0xff] %v656
    %673 = vst [vmem:[#allocation6 + $0x58] sm:$0xff] %v657
    %674 = vst [vmem:[#allocation6 + $0x60] sm:$0xff] %v658
    %675 = vst [vmem:[#allocation6 + $0x68] sm:$0xff] %v659
    %676 = vst [vmem:[#allocation6 + $0x70] sm:$0xff] %v660
    %677 = vst [vmem:[#allocation6 + $0x78] sm:$0xff] %v661
    // Predicated region
    $region34: #{tpu_custom_call.1} parent=1 // pred_check
      _
    $region35: #{tpu_custom_call.1} parent=1 // pred_check_branch
      %679 = sbr.rel (0) target = $region37
    $region36: #{tpu_custom_call.1} parent=1 // pred_region
      %s681 = ssub.s32 2048, 2048
      %682 = vsyncadd [#allocation5], %s681
      %s683 = sshll.u32 [#allocation6], 4
      %s684 = int_to_ptr.vmem [resolvable:$true] %s683
      %689 = dma.vmem_to_hbm [thread:$0]  %s684, 2048, %s7, [#allocation5], 256, 256, 16
    $region37: #{tpu_custom_call.1} parent=1 // pred_fallthru
      _
    // Predicated region
    $region38: #{tpu_custom_call.1} parent=1 // pred_check
      _
    $region39: #{tpu_custom_call.1} parent=1 // pred_check_branch
      %691 = sbr.rel (0) target = $region41
    $region40: #{tpu_custom_call.1} parent=1 // pred_region
      %692 = dma.done [#allocation5], 2048
    $region41: #{tpu_custom_call.1} parent=1 // pred_fallthru
      _
    %693 = vsyncpa [#allocation4], 1
    %694 = vsyncpa [#allocation5], 1

</llo_original>
